<compile_context>
chip_gen: v6e
topology: v6e:2x2x1
jax: 0.10.0
libtpu: 0.0.40
codegen_flags: <defaults>
</compile_context>

<pallas_src>
import jax
import jax.numpy as jnp
from jax import lax
from jax.experimental import pallas as pl
from jax.experimental.pallas import tpu as pltpu


def _dense_layer_kernel(w_ref, b_ref, x_ref, p_ref, o_ref):
    # w_ref: (Cout, K)        bf16  conv weight, im2col layout (tap-major K)
    # b_ref: (Cout, 1)        f32   conv bias
    # x_ref: (Cin,  TM)       f32   identity tile (channels on sublanes)
    # p_ref: (K,    TM)       bf16  im2col patches tile (spatial on lanes)
    # o_ref: (Cin+Cout, TM)   f32   [ identity ; relu(conv) ]
    cin = x_ref.shape[0]
    # Identity channels -> first Cin sublane rows (lane-dense, unmasked vst).
    o_ref[:cin, :] = x_ref[...]
    # One im2col matmul on the MXU per step, f32 accumulate.
    acc = jnp.dot(w_ref[...], p_ref[...], preferred_element_type=jnp.float32)
    o_ref[cin:, :] = jnp.maximum(acc + b_ref[...], 0.0).astype(o_ref.dtype)


@jax.jit
def dense_layer_forward(x_nchw, weight_oihw, bias):
    """x: (N, Cin, H, W), weight: (Cout, Cin, 3, 3), bias: (Cout,)
    Returns (N, Cin + Cout, H, W), matching the PyTorch DenseLayer."""
    N, Cin, H, W = x_nchw.shape
    Cout = weight_oihw.shape[0]
    K = 9 * Cin
    HW = H * W

    # ---- tile size for the flattened spatial (lane) axis -------------------
    LANE = 128
    TM_MAX = 1024          # mem-bound sweet spot (512-2048), bounded VMEM
    if HW <= TM_MAX:
        TM = ((HW + LANE - 1) // LANE) * LANE     # one lane-dense tile / image
    else:
        TM = TM_MAX
    HW_pad = ((HW + TM - 1) // TM) * TM
    pad = HW_pad - HW

    # ---- plain-JAX glue: pad + im2col (NO cross-N transpose) ---------------
    x_sp = jnp.pad(x_nchw, ((0, 0), (0, 0), (1, 1), (1, 1)))
    taps = [x_sp[:, :, dy:dy + H, dx:dx + W]
            for dy in range(3) for dx in range(3)]            # 9 x (N,Cin,H,W)
    # (N, 9, Cin, H, W) -> (N, K, HW) with K index = (dy*3+dx)*Cin + c
    patches = jnp.stack(taps, axis=1).reshape(N, K, HW).astype(jnp.bfloat16)
    x_flat = x_nchw.reshape(N, Cin, HW)
    if pad:
        patches = jnp.pad(patches, ((0, 0), (0, 0), (0, pad)))
        x_flat = jnp.pad(x_flat, ((0, 0), (0, 0), (0, pad)))

    # OIHW -> (Cout, 9*Cin), K index = (dy*3+dx)*Cin + c  (matches patches)
    w2 = jnp.transpose(weight_oihw, (0, 2, 3, 1)).reshape(Cout, K)
    w2 = w2.astype(jnp.bfloat16)
    b2 = bias.reshape(Cout, 1).astype(jnp.float32)

    # ---- VMEM budget: double-buffered per-step footprint, capped at 32 MiB --
    block_bytes = (K * TM * 2            # patches tile (bf16)
                   + Cin * TM * 4        # identity tile (f32)
                   + (Cin + Cout) * TM * 4   # output tile (f32)
                   + Cout * K * 2 + Cout * 4)  # weight + bias (resident)
    vmem_limit = int(min(32 * 1024 * 1024,
                         max(8 * 1024 * 1024, 4 * block_bytes + (2 << 20))))

    grid = (N, HW_pad // TM)

    out_flat = pl.pallas_call(
        _dense_layer_kernel,
        out_shape=jax.ShapeDtypeStruct((N, Cin + Cout, HW_pad), x_nchw.dtype),
        grid_spec=pltpu.PrefetchScalarGridSpec(
            num_scalar_prefetch=0,
            grid=grid,
            in_specs=[
                pl.BlockSpec((Cout, K), lambda n, m: (0, 0)),      # weight
                pl.BlockSpec((Cout, 1), lambda n, m: (0, 0)),      # bias
                pl.BlockSpec((None, Cin, TM), lambda n, m: (n, 0, m)),  # x
                pl.BlockSpec((None, K, TM), lambda n, m: (n, 0, m)),    # patches
            ],
            out_specs=pl.BlockSpec((None, Cin + Cout, TM),
                                   lambda n, m: (n, 0, m)),
        ),
        compiler_params=pltpu.CompilerParams(
            dimension_semantics=("parallel", "parallel"),
            vmem_limit_bytes=vmem_limit),
    )(w2, b2, x_flat, patches)

    out = out_flat[:, :, :HW] if pad else out_flat
    return out.reshape(N, Cin + Cout, H, W)


if __name__ == "__main__":
    # Small shapes consistent with the module's forward: (n, c_in, h, w).
    N, Cin, Cout, H, W = 2, 4, 8, 16, 16

    key = jax.random.PRNGKey(0)
    kx, kw, kb = jax.random.split(key, 3)
    x = jax.random.normal(kx, (N, Cin, H, W), dtype=jnp.float32)
    # Conv2d(Cin, Cout, 3, padding=1) parameters in PyTorch OIHW layout.
    weight = jax.random.normal(kw, (Cout, Cin, 3, 3), dtype=jnp.float32) * 0.1
    bias = jax.random.normal(kb, (Cout,), dtype=jnp.float32) * 0.1

    out = jax.block_until_ready(dense_layer_forward(x, weight, bias))
    assert out.shape == (N, Cin + Cout, H, W)

    # Reference check.  The kernel feeds the MXU in bf16 (f32 accumulate), so
    # the reference conv uses bf16-rounded activations/weights as well; the
    # identity branch must match the original f32 x exactly.
    xb = x.astype(jnp.bfloat16).astype(jnp.float32)
    wb = weight.astype(jnp.bfloat16).astype(jnp.float32)
    ref_conv = lax.conv_general_dilated(
        xb, wb, window_strides=(1, 1), padding=((1, 1), (1, 1)),
        dimension_numbers=("NCHW", "OIHW", "NCHW"),
    ) + bias.reshape(1, Cout, 1, 1)
    ref = jnp.concatenate([x, jnp.maximum(ref_conv, 0.0)], axis=1)
    assert jnp.allclose(out[:, :Cin], x), "identity branch mismatch"
    assert jnp.allclose(out, ref, atol=2e-3, rtol=2e-3), "mismatch vs reference"

    print("KERNEL_OK")
</pallas_src>

<mosaic_0001>
module attributes {stable_mosaic.version = 11 : i64} {
  func.func @_dense_layer_kernel(%arg0: i32, %arg1: i32, %arg2: memref<8x36xbf16, #tpu.memory_space<vmem>>, %arg3: memref<8x1xf32, #tpu.memory_space<vmem>>, %arg4: memref<1x4x256xf32, #tpu.memory_space<vmem>>, %arg5: memref<1x36x256xbf16, #tpu.memory_space<vmem>>, %arg6: memref<1x12x256xf32, #tpu.memory_space<vmem>>) attributes {dimension_semantics = [#tpu.dimension_semantics<parallel>, #tpu.dimension_semantics<parallel>], iteration_bounds = array<i64: 2, 1>, scalar_prefetch = 0 : i64, scratch_operands = 0 : i64, tpu.core_type = #tpu.core_type<tc>, window_params = [{pipeline_mode = #tpu.pipeline_mode<synchronous>, transform_indices = @transform_0, window_bounds = array<i64: 8, 36>}, {pipeline_mode = #tpu.pipeline_mode<synchronous>, transform_indices = @transform_1, window_bounds = array<i64: 8, 1>}, {transform_indices = @transform_2, window_bounds = array<i64: 1, 4, 256>}, {transform_indices = @transform_3, window_bounds = array<i64: 1, 36, 256>}, {transform_indices = @transform_4, window_bounds = array<i64: 1, 12, 256>}]} {
    %c0 = arith.constant 0 : index
    %c0_0 = arith.constant 0 : index
    %c0_1 = arith.constant 0 : index
    %0 = vector.load %arg4[%c0, %c0_0, %c0_1] : memref<1x4x256xf32, #tpu.memory_space<vmem>>, vector<1x4x256xf32>
    %1 = vector.shape_cast %0 : vector<1x4x256xf32> to vector<4x256xf32>
    %c0_2 = arith.constant 0 : index
    %c0_3 = arith.constant 0 : index
    %c0_4 = arith.constant 0 : index
    %2 = vector.load %arg6[%c0_2, %c0_3, %c0_4] : memref<1x12x256xf32, #tpu.memory_space<vmem>>, vector<1x4x256xf32>
    %3 = vector.shape_cast %2 : vector<1x4x256xf32> to vector<4x256xf32>
    %4 = vector.shape_cast %1 : vector<4x256xf32> to vector<1x4x256xf32>
    tpu.vector_store %arg6[%c0_2, %c0_3, %c0_4], %4 {strides = array<i32>} : memref<1x12x256xf32, #tpu.memory_space<vmem>>, vector<1x4x256xf32>,
    %c0_5 = arith.constant 0 : index
    %c0_6 = arith.constant 0 : index
    %5 = vector.load %arg2[%c0_5, %c0_6] : memref<8x36xbf16, #tpu.memory_space<vmem>>, vector<8x36xbf16>
    %c0_7 = arith.constant 0 : index
    %c0_8 = arith.constant 0 : index
    %c0_9 = arith.constant 0 : index
    %6 = vector.load %arg5[%c0_7, %c0_8, %c0_9] : memref<1x36x256xbf16, #tpu.memory_space<vmem>>, vector<1x36x256xbf16>
    %7 = vector.shape_cast %6 : vector<1x36x256xbf16> to vector<36x256xbf16>
    %cst = arith.constant dense<0.000000e+00> : vector<8x256xf32>
    %8 = tpu.matmul %5, %7, %cst {dimension_numbers = #tpu.dot_dimension_numbers<[1], [0], [0], [1], [0, 0, 1, 1], [], []>} : vector<8x36xbf16>, vector<36x256xbf16>, vector<8x256xf32> -> vector<8x256xf32>
    %c0_10 = arith.constant 0 : index
    %c0_11 = arith.constant 0 : index
    %9 = vector.load %arg3[%c0_10, %c0_11] : memref<8x1xf32, #tpu.memory_space<vmem>>, vector<8x1xf32>
    %10 = vector.broadcast %9 : vector<8x1xf32> to vector<8x256xf32>
    %11 = arith.addf %8, %10 : vector<8x256xf32>
    %cst_12 = arith.constant 0.000000e+00 : f32
    %12 = vector.broadcast %cst_12 : f32 to vector<8x256xf32>
    %13 = arith.maximumf %11, %12 : vector<8x256xf32>
    %c0_13 = arith.constant 0 : index
    %c4 = arith.constant 4 : index
    %c0_14 = arith.constant 0 : index
    %14 = vector.load %arg6[%c0_13, %c4, %c0_14] : memref<1x12x256xf32, #tpu.memory_space<vmem>>, vector<1x8x256xf32>
    %15 = vector.shape_cast %14 : vector<1x8x256xf32> to vector<8x256xf32>
    %16 = vector.shape_cast %13 : vector<8x256xf32> to vector<1x8x256xf32>
    tpu.vector_store %arg6[%c0_13, %c4, %c0_14], %16 {strides = array<i32>} : memref<1x12x256xf32, #tpu.memory_space<vmem>>, vector<1x8x256xf32>,
    return
  }
  func.func @transform_0(%arg0: i32, %arg1: i32) -> (i32, i32) {
    %c0_i32 = arith.constant 0 : i32
    %c0_i32_0 = arith.constant 0 : i32
    %c0_i32_1 = arith.constant 0 : i32
    return %c0_i32, %c0_i32_0 : i32, i32
  }
  func.func @transform_1(%arg0: i32, %arg1: i32) -> (i32, i32) {
    %c0_i32 = arith.constant 0 : i32
    %c0_i32_0 = arith.constant 0 : i32
    %c0_i32_1 = arith.constant 0 : i32
    return %c0_i32, %c0_i32_0 : i32, i32
  }
  func.func @transform_2(%arg0: i32, %arg1: i32) -> (i32, i32, i32) {
    %c0_i32 = arith.constant 0 : i32
    %c0_i32_0 = arith.constant 0 : i32
    return %arg0, %c0_i32, %arg1 : i32, i32, i32
  }
  func.func @transform_3(%arg0: i32, %arg1: i32) -> (i32, i32, i32) {
    %c0_i32 = arith.constant 0 : i32
    %c0_i32_0 = arith.constant 0 : i32
    return %arg0, %c0_i32, %arg1 : i32, i32, i32
  }
  func.func @transform_4(%arg0: i32, %arg1: i32) -> (i32, i32, i32) {
    %c0_i32 = arith.constant 0 : i32
    %c0_i32_0 = arith.constant 0 : i32
    return %arg0, %c0_i32, %arg1 : i32, i32, i32
  }
}

</mosaic_0001>

<llo_original>
// kernel: dense_layer_forward.1
$region0: #{dense_layer_forward.1}
  #allocation0 [shape = 'u32[]', space=smem, size = 0x4, offset = 0x4, fixed_abs, tag = 'smem constant byte address 0x4 - core index']
  #allocation1 [shape = 'u32[144,128]{1,0:T(1,128)}', space=vmem, size = 0x12000, scoped, tag = 'internal scratch']
  %s0 = inlined_call_operand.vmem [shape: bf16[8,36], index: 0, kind: input, shape index: {}]
  %s1 = inlined_call_operand.vmem [shape: f32[8,1], index: 1, kind: input, shape index: {}]
  %s2 = inlined_call_operand.vmem [shape: f32[2,4,256], index: 2, kind: input, shape index: {}]
  %s3 = inlined_call_operand.vmem [shape: bf16[2,36,256], index: 3, kind: input, shape index: {}]
  %s4 = inlined_call_operand.vmem [shape: f32[2,12,256], index: 4, kind: output, shape index: {}]
  %s5 = sld [smem:[#allocation0]]
  $region49: #{dense_layer_forward.1} parent=0
    _
  %s7 = ssub.s32 1, %s5
  %s8 = scalar_select 0, %s7, %s5
  loop: start=0, step=1, limit=4
  $region2: #{dense_layer_forward.1} parent=0 // loop_pre_header
    _
  $region3: #{dense_layer_forward.1} parent=0 // loop_header
    %s10 = sphi 0, %s14
    %p11 = scmp.ge.s32.totalorder %s10, 4
    %s17 = sphi 0, %s29
    %s18 = sphi 0, %s25
    %s19 = sphi 0, %s17
    %s20 = sphi 0, %s18
    %s21 = sphi 0, %s19
    %s22 = sphi 0, %s20
    %s30 = sphi 0, %s30
    %s32 = sphi 0, %s30
    %s33 = sphi 0, %s32
    %s47 = sphi 0, %s33
    %s51 = sphi 0, %s51
    %s53 = sphi 0, %s51
    %s54 = sphi 0, %s53
    %s68 = sphi 0, %s54
    %s76 = sphi 0, %s78
    %s79 = sphi 0, %s76
    %s80 = sphi 0, %s79
    %s96 = sphi 0, %s80
    %s104 = sphi 0, %s106
    %s107 = sphi 0, %s104
    %s108 = sphi 0, %s107
    %s124 = sphi 0, %s108
    %s132 = sphi 0, %s134
    %s135 = sphi 0, %s132
    %s136 = sphi 0, %s135
    %s152 = sphi 0, %s136
  $region4: #{dense_layer_forward.1} parent=0 // loop_header_branch
    %13 = sbr.rel (%p11) target = $region8
  $region5: #{dense_layer_forward.1} parent=0 // loop_body
    %s15 = ssub.s32 %s10, 1
    %s16 = ssub.s32 %s10, 2
    %s23 = sadd.s32 1, %s18
    %p24 = scmp.ge.s32.totalorder %s23, 1
    %s25 = scalar_select %p24, 0, %s23
    %s26 = sadd.s32 1, %s17
    %s27 = scalar_select %p24, %s26, %s17
    %p28 = scmp.ge.s32.totalorder %s27, 2
    %s29 = scalar_select %p28, 0, %s27
    %s31 = sadd.s32 %s30, 1
    %p34 = scmp.eq.s32.totalorder %s10, 1
    %p35 = scmp.ne.s32.totalorder %s30, %s32
    %p36 = scmp.eq.s32.totalorder %s10, 0
    %p37 = por %p35, %p36
    %p38 = scmp.ne.s32.totalorder %s30, %s32
    %p39 = scmp.eq.s32.totalorder %s15, 1
    %p40 = por %p38, %p39
    %p41 = scmp.ne.s32.totalorder %s32, %s33
    %p42 = scmp.eq.s32.totalorder %s15, 0
    %p43 = por %p41, %p42
    %p44 = scmp.ne.s32.totalorder %s32, %s33
    %p45 = scmp.eq.s32.totalorder %s16, 1
    %p46 = por %p44, %p45
    %p48 = scmp.ne.s32.totalorder %s33, %s47
    %p49 = scmp.eq.s32.totalorder %s16, 0
    %p50 = por %p48, %p49
    %s52 = sadd.s32 %s51, 1
    %p55 = scmp.eq.s32.totalorder %s10, 1
    %p56 = scmp.ne.s32.totalorder %s51, %s53
    %p57 = scmp.eq.s32.totalorder %s10, 0
    %p58 = por %p56, %p57
    %p59 = scmp.ne.s32.totalorder %s51, %s53
    %p60 = scmp.eq.s32.totalorder %s15, 1
    %p61 = por %p59, %p60
    %p62 = scmp.ne.s32.totalorder %s53, %s54
    %p63 = scmp.eq.s32.totalorder %s15, 0
    %p64 = por %p62, %p63
    %p65 = scmp.ne.s32.totalorder %s53, %s54
    %p66 = scmp.eq.s32.totalorder %s16, 1
    %p67 = por %p65, %p66
    %p69 = scmp.ne.s32.totalorder %s54, %s68
    %p70 = scmp.eq.s32.totalorder %s16, 0
    %p71 = por %p69, %p70
    %s72 = ssub.s32 %s17, %s29
    %s73 = ssub.s32 %s18, %s25
    %s74 = sor.u32 %s72, %s73
    %p75 = scmp.eq.s32.totalorder %s74, 0
    %s77 = sadd.s32 %s76, 1
    %s78 = scalar_select %p75, %s76, %s77
    %p81 = pneg %p75
    %p82 = scmp.eq.s32.totalorder %s10, 1
    %p83 = por %p81, %p82
    %p84 = scmp.ne.s32.totalorder %s76, %s79
    %p85 = scmp.eq.s32.totalorder %s10, 0
    %p86 = por %p84, %p85
    %p87 = scmp.ne.s32.totalorder %s76, %s79
    %p88 = scmp.eq.s32.totalorder %s15, 1
    %p89 = por %p87, %p88
    %p90 = scmp.ne.s32.totalorder %s79, %s80
    %p91 = scmp.eq.s32.totalorder %s15, 0
    %p92 = por %p90, %p91
    %p93 = scmp.ne.s32.totalorder %s79, %s80
    %p94 = scmp.eq.s32.totalorder %s16, 1
    %p95 = por %p93, %p94
    %p97 = scmp.ne.s32.totalorder %s80, %s96
    %p98 = scmp.eq.s32.totalorder %s16, 0
    %p99 = por %p97, %p98
    %s100 = ssub.s32 %s17, %s29
    %s101 = ssub.s32 %s18, %s25
    %s102 = sor.u32 %s100, %s101
    %p103 = scmp.eq.s32.totalorder %s102, 0
    %s105 = sadd.s32 %s104, 1
    %s106 = scalar_select %p103, %s104, %s105
    %p109 = pneg %p103
    %p110 = scmp.eq.s32.totalorder %s10, 1
    %p111 = por %p109, %p110
    %p112 = scmp.ne.s32.totalorder %s104, %s107
    %p113 = scmp.eq.s32.totalorder %s10, 0
    %p114 = por %p112, %p113
    %p115 = scmp.ne.s32.totalorder %s104, %s107
    %p116 = scmp.eq.s32.totalorder %s15, 1
    %p117 = por %p115, %p116
    %p118 = scmp.ne.s32.totalorder %s107, %s108
    %p119 = scmp.eq.s32.totalorder %s15, 0
    %p120 = por %p118, %p119
    %p121 = scmp.ne.s32.totalorder %s107, %s108
    %p122 = scmp.eq.s32.totalorder %s16, 1
    %p123 = por %p121, %p122
    %p125 = scmp.ne.s32.totalorder %s108, %s124
    %p126 = scmp.eq.s32.totalorder %s16, 0
    %p127 = por %p125, %p126
    %s128 = ssub.s32 %s17, %s29
    %s129 = ssub.s32 %s18, %s25
    %s130 = sor.u32 %s128, %s129
    %p131 = scmp.eq.s32.totalorder %s130, 0
    %s133 = sadd.s32 %s132, 1
    %s134 = scalar_select %p131, %s132, %s133
    %p137 = pneg %p131
    %p138 = scmp.eq.s32.totalorder %s10, 1
    %p139 = por %p137, %p138
    %p140 = scmp.ne.s32.totalorder %s132, %s135
    %p141 = scmp.eq.s32.totalorder %s10, 0
    %p142 = por %p140, %p141
    %p143 = scmp.ne.s32.totalorder %s132, %s135
    %p144 = scmp.eq.s32.totalorder %s15, 1
    %p145 = por %p143, %p144
    %p146 = scmp.ne.s32.totalorder %s135, %s136
    %p147 = scmp.eq.s32.totalorder %s15, 0
    %p148 = por %p146, %p147
    %p149 = scmp.ne.s32.totalorder %s135, %s136
    %p150 = scmp.eq.s32.totalorder %s16, 1
    %p151 = por %p149, %p150
    %p153 = scmp.ne.s32.totalorder %s136, %s152
    %p154 = scmp.eq.s32.totalorder %s16, 0
    %p155 = por %p153, %p154
    %p156 = scmp.le.s32.totalorder 1, %s10
    %p157 = scmp.lt.s32.totalorder %s10, 3
    %p158 = pnand %p156, %p157
    %p159 = pneg %p158
    // Predicated region
    $region9: #{dense_layer_forward.1} parent=5 // pred_check
      _
    $region10: #{dense_layer_forward.1} parent=5 // pred_check_branch
      %161 = sbr.rel (%p158) target = $region12
    $region11: #{dense_layer_forward.1} parent=5 // pred_region
      %s162 = ssub.s32 %s10, 1
      // Predicated region
      $region13: #{dense_layer_forward.1} parent=11 // pred_check
        %p163 = pneg %p43
      $region14: #{dense_layer_forward.1} parent=11 // pred_check_branch
        %165 = sbr.rel (%p163) target = $region16
      $region15: #{dense_layer_forward.1} parent=11 // pred_region
        _
      $region16: #{dense_layer_forward.1} parent=11 // pred_fallthru
        _
      // Predicated region
      $region17: #{dense_layer_forward.1} parent=11 // pred_check
        %p166 = pneg %p64
      $region18: #{dense_layer_forward.1} parent=11 // pred_check_branch
        %168 = sbr.rel (%p166) target = $region20
      $region19: #{dense_layer_forward.1} parent=11 // pred_region
        _
      $region20: #{dense_layer_forward.1} parent=11 // pred_fallthru
        _
    $region12: #{dense_layer_forward.1} parent=5 // pred_fallthru
      _
    %p169 = scmp.lt.s32.totalorder %s10, 2
    // Predicated region
    $region21: #{dense_layer_forward.1} parent=5 // pred_check
      %p170 = pneg %p169
    $region22: #{dense_layer_forward.1} parent=5 // pred_check_branch
      %172 = sbr.rel (%p170) target = $region24
    $region23: #{dense_layer_forward.1} parent=5 // pred_region
      // Predicated region
      $region25: #{dense_layer_forward.1} parent=23 // pred_check
        %p173 = pneg %p86
      $region26: #{dense_layer_forward.1} parent=23 // pred_check_branch
        %175 = sbr.rel (%p173) target = $region28
      $region27: #{dense_layer_forward.1} parent=23 // pred_region
        %s176 = smul.u32 2, %s18
        %p177 = scmp.lt.s32.totalorder %s17, 1
        %s178 = scalar_select %p177, %s17, 1
        %p179 = scmp.lt.s32.totalorder %s176, 1
        %s180 = scalar_select %p179, %s176, 1
        %s181 = smul.addr %s178, 2
        %s182 = sadd.s32 %s180, %s181
        %s183 = smul.addr %s182, 4
        %s184 = scalar_lea.vmem %s2, %s183
        %s185 = smul.u32 2, %s18
      $region28: #{dense_layer_forward.1} parent=23 // pred_fallthru
        _
      // Predicated region
      $region29: #{dense_layer_forward.1} parent=23 // pred_check
        %p186 = pneg %p114
      $region30: #{dense_layer_forward.1} parent=23 // pred_check_branch
        %188 = sbr.rel (%p186) target = $region32
      $region31: #{dense_layer_forward.1} parent=23 // pred_region
        %s189 = smul.u32 2, %s18
        %p190 = scmp.lt.s32.totalorder %s17, 1
        %s191 = scalar_select %p190, %s17, 1
        %p192 = scmp.lt.s32.totalorder %s189, 1
        %s193 = scalar_select %p192, %s189, 1
        %s194 = smul.addr %s191, 10
        %s195 = sadd.s32 %s193, %s194
        %s196 = smul.addr %s195, 4
        %s197 = scalar_lea.vmem %s3, %s196
        %s198 = smul.u32 2, %s18
      $region32: #{dense_layer_forward.1} parent=23 // pred_fallthru
        _
    $region24: #{dense_layer_forward.1} parent=5 // pred_fallthru
      _
    %p199 = scmp.le.s32.totalorder 1, %s10
    %p200 = scmp.lt.s32.totalorder %s10, 3
    %p201 = pnand %p199, %p200
    %p202 = pneg %p201
    // Predicated region
    $region33: #{dense_layer_forward.1} parent=5 // pred_check
      _
    $region34: #{dense_layer_forward.1} parent=5 // pred_check_branch
      %204 = sbr.rel (%p201) target = $region36
    $region35: #{dense_layer_forward.1} parent=5 // pred_region
      %s205 = ssub.s32 %s10, 1
      %p206 = pneg %p43
      %p207 = pneg %p40
      %p208 = pneg %p64
      %p209 = pneg %p61
      %s210 = smul.u32 2, %s20
      %p211 = scmp.lt.s32.totalorder %s19, 1
      %s212 = scalar_select %p211, %s19, 1
      %p213 = scmp.lt.s32.totalorder %s210, 1
      %s214 = scalar_select %p213, %s210, 1
      %s215 = smul.addr %s212, 2
      %s216 = sadd.s32 %s214, %s215
      %s217 = smul.addr %s216, 4
      %s218 = scalar_lea.vmem %s2, %s217
      %p219 = pneg %p92
      %p220 = pneg %p89
      %s221 = smul.u32 2, %s20
      %p222 = scmp.lt.s32.totalorder %s19, 1
      %s223 = scalar_select %p222, %s19, 1
      %p224 = scmp.lt.s32.totalorder %s221, 1
      %s225 = scalar_select %p224, %s221, 1
      %s226 = smul.addr %s223, 10
      %s227 = sadd.s32 %s225, %s226
      %s228 = smul.addr %s227, 4
      %s229 = scalar_lea.vmem %s3, %s228
      %p230 = pneg %p120
      %p231 = pneg %p117
      %p232 = pneg %p148
      %p233 = pneg %p145
      %s234 = smul.u32 2, %s20
      %p235 = scmp.lt.s32.totalorder %s19, 1
      %s236 = scalar_select %p235, %s19, 1
      %p237 = scmp.lt.s32.totalorder %s234, 1
      %s238 = scalar_select %p237, %s234, 1
      %s239 = smul.addr %s236, 4
      %s240 = sadd.s32 %s238, %s239
      %s241 = smul.addr %s240, 8
      %s242 = scalar_lea.vmem %s4, %s241
      %s243 = smul.u32 2, %s20
      %p244 = scmp.lt.s32.totalorder %s19, 1
      %s245 = scalar_select %p244, %s19, 1
      %p246 = scmp.lt.s32.totalorder %s243, 1
      %s247 = scalar_select %p246, %s243, 1
      %s248 = smul.addr %s245, 2
      %s249 = sadd.s32 %s247, %s248
      %s250 = smul.addr %s249, 4
      %s251 = scalar_lea.vmem %s2, %s250
      %s252 = smul.u32 2, %s20
      %s253 = smul.u32 2, %s20
      %p254 = scmp.lt.s32.totalorder %s19, 1
      %s255 = scalar_select %p254, %s19, 1
      %p256 = scmp.lt.s32.totalorder %s253, 1
      %s257 = scalar_select %p256, %s253, 1
      %s258 = smul.addr %s255, 10
      %s259 = sadd.s32 %s257, %s258
      %s260 = smul.addr %s259, 4
      %s261 = scalar_lea.vmem %s3, %s260
      %s262 = smul.u32 2, %s20
      %s263 = smul.u32 2, %s20
      %p264 = scmp.lt.s32.totalorder %s19, 1
      %s265 = scalar_select %p264, %s19, 1
      %p266 = scmp.lt.s32.totalorder %s263, 1
      %s267 = scalar_select %p266, %s263, 1
      %s268 = smul.addr %s265, 4
      %s269 = sadd.s32 %s267, %s268
      %s270 = smul.addr %s269, 8
      %s271 = scalar_lea.vmem %s4, %s270
      %s272 = smul.u32 2, %s20
      %v274 = vld [vmem:[%s251] sm:$0xff]
      %v276 = vcombine.high %v274, %v274
      %278 = vst [vmem:[%s271] sm:$0xf] %v274
      %279 = vst [vmem:[%s271 + $0x8] sm:$0xf] %v276
      %v280 = vld [vmem:[%s0] sm:$0xf]
      %v281 = vld [vmem:[%s261] sm:$0xff]
      %v282 = vld [vmem:[%s261 + $0x8] sm:$0xff]
      %v283 = vld [vmem:[%s261 + $0x10] sm:$0xff]
      %v284 = vld [vmem:[%s261 + $0x18] sm:$0xff]
      %v285 = vld [vmem:[%s261 + $0x20] sm:$0x33]
      %v286 = vld [vmem:[%s1] sm:$0xff]
      %288 = vset.pattern.permute.xlu0 0
      %289 = vperm.xlu0 %288, %v286
      %v290 = vpop.permute.xlu0 %289
      %v297 = vunpack.c.l.b16 %v281
      %v298 = vunpack.c.h.b16 %v281
      %v299 = vunpack.c.l.b16 %v282
      %v300 = vunpack.c.h.b16 %v282
      %v301 = vunpack.c.l.b16 %v283
      %v302 = vunpack.c.h.b16 %v283
      %v303 = vunpack.c.l.b16 %v284
      %v304 = vunpack.c.h.b16 %v284
      %v305 = vunpack.c.l.b16 %v285
      %v306 = vunpack.c.h.b16 %v285
      %v307 = vpack.c.b16 %v299, %v297
      %v308 = vpack.c.b16 %v300, %v298
      %v309 = vpack.c.b16 %v303, %v301
      %v310 = vpack.c.b16 %v304, %v302
      %v311 = vpack.c.b16 %v305, %v305
      %v312 = vpack.c.b16 %v306, %v306
      %vm317 = vcmask 293888
      %v319 = vsel %vm317, %v280, 0
      %vm321 = vcmask 1041408
      %v323 = vsel %vm321, %v311, 0
      %v326 = vsel %vm321, %v312, 0
      %328 = vmatprep.subr.bf16.mxu0 0
      %329 = vmatpush1.bf16.msra.mxu0 0
      %330 = vmatprep.subr.bf16.mxu0 0
      %331 = vmatpush1.bf16.msra.mxu0 0
      %332 = vmatprep.subr.bf16.mxu0 0
      %333 = vmatpush1.bf16.msra.mxu0 0
      %334 = vmatprep.subr.bf16.mxu0 0
      %335 = vmatpush1.bf16.msra.mxu0 0
      %336 = vmatprep.subr.bf16.mxu0 0
      %337 = vmatpush1.bf16.msra.mxu0 0
      %338 = vmatprep.subr.bf16.mxu0 %v326
      %339 = vmatpush1.bf16.msra.mxu0 %v323
      %340 = vmatprep.subr.bf16.mxu0 %v310
      %341 = vmatpush1.bf16.msra.mxu0 %v309
      %342 = vmatprep.subr.bf16.mxu0 %v308
      %343 = vmatpush1.bf16.msra.mxu0 %v307
      %344 = vmatprep.subr.bf16.mxu0 0
      %345 = vmatpush2.bf16.msra.mxu0 0
      %346 = vmatprep.subr.bf16.mxu0 0
      %347 = vmatpush2.bf16.msra.mxu0 0
      %348 = vmatprep.subr.bf16.mxu0 0
      %349 = vmatpush2.bf16.msra.mxu0 0
      %350 = vmatprep.subr.bf16.mxu0 0
      %351 = vmatpush2.bf16.msra.mxu0 0
      %352 = vmatprep.subr.bf16.mxu0 0
      %353 = vmatpush2.bf16.msra.mxu0 0
      %354 = vmatprep.subr.bf16.mxu0 0
      %355 = vmatpush2.bf16.msra.mxu0 0
      %356 = vmatprep.subr.bf16.mxu0 0
      %357 = vmatpush2.bf16.msra.mxu0 0
      %358 = vmatprep.subr.bf16.mxu0 0
      %359 = vmatpush2.bf16.msra.mxu0 0
      %360 = vmatprep.mubr.bf16.mxu0 0
      %361 = vmatmul.mubr.bf16.gmra.mxu0 %v319
      %v362 = vpop.f32.mrf.mxu0
      %v363 = vadd.f32 %v290, %v362
      %v364 = vpop.f32.mrf.mxu0
      %v365 = vadd.f32 %v290, %v364
      %v366 = vpop.f32.mrf.mxu0
      %v367 = vpop.f32.mrf.mxu0
      %368 = vdwg.mxu0
      %v369 = vmax.f32 %v363, 0.0
      %v370 = vmax.f32 %v365, 0.0
      %v373 = vrot.slane %v369, 4
      %v374 = vrot.slane %v370, 4
      %377 = vst [vmem:[%s271] sm:$0xf0] %v373
      %378 = vst [vmem:[%s271 + $0x8] sm:$0xf0] %v374
      %379 = vst [vmem:[%s271 + $0x10] sm:$0xf] %v373
      %380 = vst [vmem:[%s271 + $0x18] sm:$0xf] %v374
      %s381 = smul.u32 2, %s20
      %p382 = scmp.lt.s32.totalorder %s19, 1
      %s383 = scalar_select %p382, %s19, 1
      %p384 = scmp.lt.s32.totalorder %s381, 1
      %s385 = scalar_select %p384, %s381, 1
      %s386 = smul.addr %s383, 4
      %s387 = sadd.s32 %s385, %s386
      %s388 = smul.addr %s387, 8
      %s389 = scalar_lea.vmem %s4, %s388
      // Predicated region
      $region37: #{dense_layer_forward.1} parent=35 // pred_check
        %p390 = pneg %p145
      $region38: #{dense_layer_forward.1} parent=35 // pred_check_branch
        %392 = sbr.rel (%p390) target = $region40
      $region39: #{dense_layer_forward.1} parent=35 // pred_region
        %s393 = smul.u32 2, %s20
      $region40: #{dense_layer_forward.1} parent=35 // pred_fallthru
        _
    $region36: #{dense_layer_forward.1} parent=5 // pred_fallthru
      _
    %p394 = scmp.le.s32.totalorder 2, %s10
    // Predicated region
    $region41: #{dense_layer_forward.1} parent=5 // pred_check
      %p395 = pneg %p394
    $region42: #{dense_layer_forward.1} parent=5 // pred_check_branch
      %397 = sbr.rel (%p395) target = $region44
    $region43: #{dense_layer_forward.1} parent=5 // pred_region
      %s398 = ssub.s32 %s10, 2
      // Predicated region
      $region45: #{dense_layer_forward.1} parent=43 // pred_check
        %p399 = pneg %p151
      $region46: #{dense_layer_forward.1} parent=43 // pred_check_branch
        %401 = sbr.rel (%p399) target = $region48
      $region47: #{dense_layer_forward.1} parent=43 // pred_region
        %s402 = smul.u32 2, %s22
        %p403 = scmp.lt.s32.totalorder %s21, 1
        %s404 = scalar_select %p403, %s21, 1
        %p405 = scmp.lt.s32.totalorder %s402, 1
        %s406 = scalar_select %p405, %s402, 1
        %s407 = smul.addr %s404, 4
        %s408 = sadd.s32 %s406, %s407
        %s409 = smul.addr %s408, 8
        %s410 = scalar_lea.vmem %s4, %s409
      $region48: #{dense_layer_forward.1} parent=43 // pred_fallthru
        _
    $region44: #{dense_layer_forward.1} parent=5 // pred_fallthru
      _
  $region6: #{dense_layer_forward.1} parent=0 // loop_footer
    %s14 = sadd.s32 1, %s10
  $region7: #{dense_layer_forward.1} parent=0 // loop_footer_branch
    %9 = sbr.rel target = $region3
  $region8: #{dense_layer_forward.1} parent=0 // loop_exit
    _

</llo_original>
